<compile_context>
chip_gen: v6e
topology: v6e:2x2x1
jax: 0.10.0
libtpu: 0.0.40
codegen_flags: <defaults>
</compile_context>

<pallas_src>
import functools
import math

import jax
import jax.numpy as jnp
from jax.experimental import pallas as pl
from jax.experimental.pallas import tpu as pltpu


def _kg2e_kernel_batch_lanes(hm_ref, hv_ref, rm_ref, rv_ref, tm_ref, tv_ref,
                             out_ref, *, dim: int, exact: bool):
    """Tiles are (d, TB): feature dim on sublanes, batch on lanes.

    Output tile is (1, TB) -> lane-dense store.
    """
    eps = jnp.finfo(hm_ref.dtype).eps

    e_var = hv_ref[...] + tv_ref[...]                 # S_e = S_h + S_t
    r_var_safe = jnp.maximum(rv_ref[...], eps)
    e_var_safe = jnp.maximum(e_var, eps)
    mu = rm_ref[...] - hm_ref[...] + tm_ref[...]      # mu_r - (mu_h - mu_t)

    inv_r = 1.0 / r_var_safe                          # hoisted, one per element
    # Fused single reduction over the feature axis (axis 0 here).
    acc = (e_var + mu * mu) * inv_r \
        + jnp.log(r_var_safe) - jnp.log(e_var_safe)
    result = jnp.sum(acc, axis=0)                     # (TB,)

    if exact:
        result = 0.5 * (result - float(dim))

    out_ref[...] = (-result)[None, :]


def _kg2e_kernel_batch_sublanes(hm_ref, hv_ref, rm_ref, rv_ref, tm_ref, tv_ref,
                                out_ref, *, dim: int, exact: bool):
    """Tiles are (TB, d): batch on sublanes, feature dim on lanes (d >= 128)."""
    eps = jnp.finfo(hm_ref.dtype).eps

    e_var = hv_ref[...] + tv_ref[...]
    r_var_safe = jnp.maximum(rv_ref[...], eps)
    e_var_safe = jnp.maximum(e_var, eps)
    mu = rm_ref[...] - hm_ref[...] + tm_ref[...]

    inv_r = 1.0 / r_var_safe
    acc = (e_var + mu * mu) * inv_r \
        + jnp.log(r_var_safe) - jnp.log(e_var_safe)
    result = jnp.sum(acc, axis=-1)                    # (TB,)

    if exact:
        result = 0.5 * (result - float(dim))

    out_ref[...] = (-result)[:, None]


def _round_up(x: int, m: int) -> int:
    return ((x + m - 1) // m) * m


def kg2e_similarity(h_mean, h_var, r_mean, r_var, t_mean, t_var, *, exact=True):
    """Pallas wrapper. Inputs: (*batch_dims, d) arrays. Output: (*batch_dims,)."""
    batch_dims = h_mean.shape[:-1]
    d = h_mean.shape[-1]
    b = int(math.prod(batch_dims)) if batch_dims else 1

    def flat(x):
        return jnp.asarray(x, jnp.float32).reshape(b, d)

    hm, hv = flat(h_mean), flat(h_var)
    rm, rv = flat(r_mean), flat(r_var)
    tm, tv = flat(t_mean), flat(t_var)

    # Small d => put batch on the lane axis for full lane utilization.
    transposed = d < 128

    # Tile-size selection from a conservative VMEM budget:
    # 6 f32 input streams x 2 pipeline buffers x TB x d x 4 B <= ~24 MiB
    # (fits v7x's 64 MiB physical VMEM and a raised scoped limit everywhere).
    budget_bytes = 24 << 20
    bytes_per_row = 6 * 2 * d * 4
    granule = 128 if transposed else 8       # lane vs. sublane granularity
    cap = 4096 if transposed else 1024
    tb = (budget_bytes // bytes_per_row) // granule * granule
    tb = max(granule, min(cap, tb))
    # Don't make the tile larger than the (padded) problem itself.
    tb = min(tb, _round_up(b, granule))
    b_pad = _round_up(b, tb)

    if transposed:
        def prep(x, pad_value):
            x = x.T                                         # (d, b)
            if b_pad > b:
                x = jnp.pad(x, ((0, 0), (0, b_pad - b)),
                            constant_values=pad_value)
            return x

        args = (prep(hm, 0.0), prep(hv, 1.0), prep(rm, 0.0),
                prep(rv, 1.0), prep(tm, 0.0), prep(tv, 1.0))
        kernel = functools.partial(_kg2e_kernel_batch_lanes, dim=d, exact=exact)
        in_spec = pl.BlockSpec((d, tb), lambda i: (0, i))
        out_spec = pl.BlockSpec((1, tb), lambda i: (0, i))
        out_shape = jax.ShapeDtypeStruct((1, b_pad), jnp.float32)
    else:
        def prep(x, pad_value):
            if b_pad > b:
                x = jnp.pad(x, ((0, b_pad - b), (0, 0)),
                            constant_values=pad_value)
            return x

        args = (prep(hm, 0.0), prep(hv, 1.0), prep(rm, 0.0),
                prep(rv, 1.0), prep(tm, 0.0), prep(tv, 1.0))
        kernel = functools.partial(_kg2e_kernel_batch_sublanes, dim=d, exact=exact)
        in_spec = pl.BlockSpec((tb, d), lambda i: (i, 0))
        out_spec = pl.BlockSpec((tb, 1), lambda i: (i, 0))
        out_shape = jax.ShapeDtypeStruct((b_pad, 1), jnp.float32)

    out = pl.pallas_call(
        kernel,
        out_shape=out_shape,
        grid=(b_pad // tb,),
        in_specs=[in_spec] * 6,
        out_specs=out_spec,
        compiler_params=pltpu.CompilerParams(
            dimension_semantics=("parallel",),
            vmem_limit_bytes=48 << 20,
        ),
    )(*args)

    if transposed:
        out = out[0, :b]
    else:
        out = out[:b, 0]
    return out.reshape(batch_dims)


def _reference(h_mean, h_var, r_mean, r_var, t_mean, t_var, *, exact=True):
    """Pure-JAX reference mirroring pykeen's NegativeKullbackLeiblerDivergence."""
    eps = jnp.finfo(jnp.float32).eps
    e_var = h_var + t_var
    r_var_safe = jnp.maximum(r_var, eps)
    e_var_safe = jnp.maximum(e_var, eps)
    mu = r_mean - h_mean + t_mean
    terms = (jnp.sum(e_var / r_var_safe, -1)
             + jnp.sum(mu ** 2 / r_var_safe, -1)
             + jnp.sum(jnp.log(r_var_safe), -1)
             - jnp.sum(jnp.log(e_var_safe), -1))
    if exact:
        terms = 0.5 * (terms - h_mean.shape[-1])
    return -terms


def _make_inputs(key, batch_dims, d):
    keys = jax.random.split(key, 6)
    h_mean = jax.random.normal(keys[0], batch_dims + (d,), jnp.float32)
    r_mean = jax.random.normal(keys[1], batch_dims + (d,), jnp.float32)
    t_mean = jax.random.normal(keys[2], batch_dims + (d,), jnp.float32)
    # Diagonal covariances must be positive (KG2E clamps them to [c_min, c_max]).
    h_var = jax.nn.softplus(jax.random.normal(keys[3], batch_dims + (d,), jnp.float32)) + 0.05
    r_var = jax.nn.softplus(jax.random.normal(keys[4], batch_dims + (d,), jnp.float32)) + 0.05
    t_var = jax.nn.softplus(jax.random.normal(keys[5], batch_dims + (d,), jnp.float32)) + 0.05
    return h_mean, h_var, r_mean, r_var, t_mean, t_var


if __name__ == "__main__":
    key = jax.random.PRNGKey(0)
    k1, k2 = jax.random.split(key)

    # Case 1: small embedding dim (d < 128) -> batch-on-lanes transposed path.
    batch_dims, d = (2, 3), 32
    hm, hv, rm, rv, tm, tv = _make_inputs(k1, batch_dims, d)
    out = jax.block_until_ready(
        kg2e_similarity(hm, hv, rm, rv, tm, tv, exact=True))
    ref = _reference(hm, hv, rm, rv, tm, tv, exact=True)
    assert out.shape == batch_dims, (out.shape, batch_dims)
    assert jnp.allclose(out, ref, rtol=1e-5, atol=1e-5), (out, ref)

    # Case 2: d >= 128 -> batch-on-sublanes path.
    batch_dims, d = (4,), 128
    hm, hv, rm, rv, tm, tv = _make_inputs(k2, batch_dims, d)
    out = jax.block_until_ready(
        kg2e_similarity(hm, hv, rm, rv, tm, tv, exact=False))
    ref = _reference(hm, hv, rm, rv, tm, tv, exact=False)
    assert out.shape == batch_dims, (out.shape, batch_dims)
    assert jnp.allclose(out, ref, rtol=1e-5, atol=1e-5), (out, ref)

    print("KERNEL_OK")
</pallas_src>

<mosaic_0001>
module attributes {stable_mosaic.version = 11 : i64} {
  func.func @_kg2e_kernel_batch_lanes(%arg0: i32, %arg1: memref<32x128xf32, #tpu.memory_space<vmem>>, %arg2: memref<32x128xf32, #tpu.memory_space<vmem>>, %arg3: memref<32x128xf32, #tpu.memory_space<vmem>>, %arg4: memref<32x128xf32, #tpu.memory_space<vmem>>, %arg5: memref<32x128xf32, #tpu.memory_space<vmem>>, %arg6: memref<32x128xf32, #tpu.memory_space<vmem>>, %arg7: memref<1x128xf32, #tpu.memory_space<vmem>>) attributes {dimension_semantics = [#tpu.dimension_semantics<parallel>], iteration_bounds = array<i64: 1>, scalar_prefetch = 0 : i64, scratch_operands = 0 : i64, tpu.core_type = #tpu.core_type<tc>, window_params = [{transform_indices = @transform_0, window_bounds = array<i64: 32, 128>}, {transform_indices = @transform_1, window_bounds = array<i64: 32, 128>}, {transform_indices = @transform_2, window_bounds = array<i64: 32, 128>}, {transform_indices = @transform_3, window_bounds = array<i64: 32, 128>}, {transform_indices = @transform_4, window_bounds = array<i64: 32, 128>}, {transform_indices = @transform_5, window_bounds = array<i64: 32, 128>}, {transform_indices = @transform_6, window_bounds = array<i64: 1, 128>}]} {
    %c0 = arith.constant 0 : index
    %c0_0 = arith.constant 0 : index
    %0 = vector.load %arg2[%c0, %c0_0] : memref<32x128xf32, #tpu.memory_space<vmem>>, vector<32x128xf32>
    %c0_1 = arith.constant 0 : index
    %c0_2 = arith.constant 0 : index
    %1 = vector.load %arg6[%c0_1, %c0_2] : memref<32x128xf32, #tpu.memory_space<vmem>>, vector<32x128xf32>
    %2 = arith.addf %0, %1 : vector<32x128xf32>
    %c0_3 = arith.constant 0 : index
    %c0_4 = arith.constant 0 : index
    %3 = vector.load %arg4[%c0_3, %c0_4] : memref<32x128xf32, #tpu.memory_space<vmem>>, vector<32x128xf32>
    %cst = arith.constant 1.1920929E-7 : f32
    %4 = vector.broadcast %cst : f32 to vector<32x128xf32>
    %5 = arith.maximumf %3, %4 : vector<32x128xf32>
    %cst_5 = arith.constant 1.1920929E-7 : f32
    %6 = vector.broadcast %cst_5 : f32 to vector<32x128xf32>
    %7 = arith.maximumf %2, %6 : vector<32x128xf32>
    %c0_6 = arith.constant 0 : index
    %c0_7 = arith.constant 0 : index
    %8 = vector.load %arg3[%c0_6, %c0_7] : memref<32x128xf32, #tpu.memory_space<vmem>>, vector<32x128xf32>
    %c0_8 = arith.constant 0 : index
    %c0_9 = arith.constant 0 : index
    %9 = vector.load %arg1[%c0_8, %c0_9] : memref<32x128xf32, #tpu.memory_space<vmem>>, vector<32x128xf32>
    %10 = arith.subf %8, %9 : vector<32x128xf32>
    %c0_10 = arith.constant 0 : index
    %c0_11 = arith.constant 0 : index
    %11 = vector.load %arg5[%c0_10, %c0_11] : memref<32x128xf32, #tpu.memory_space<vmem>>, vector<32x128xf32>
    %12 = arith.addf %10, %11 : vector<32x128xf32>
    %cst_12 = arith.constant 1.000000e+00 : f32
    %13 = vector.broadcast %cst_12 : f32 to vector<32x128xf32>
    %14 = arith.divf %13, %5 : vector<32x128xf32>
    %15 = arith.mulf %12, %12 : vector<32x128xf32>
    %16 = arith.addf %2, %15 : vector<32x128xf32>
    %17 = arith.mulf %16, %14 : vector<32x128xf32>
    %18 = math.log %5 : vector<32x128xf32>
    %19 = arith.addf %17, %18 : vector<32x128xf32>
    %20 = math.log %7 : vector<32x128xf32>
    %21 = arith.subf %19, %20 : vector<32x128xf32>
    %cst_13 = arith.constant dense<0.000000e+00> : vector<128xf32>
    %22 = vector.multi_reduction <add>, %21, %cst_13 [0] : vector<32x128xf32> to vector<128xf32>
    %cst_14 = arith.constant 3.200000e+01 : f32
    %23 = vector.broadcast %cst_14 : f32 to vector<128xf32>
    %24 = arith.subf %22, %23 : vector<128xf32>
    %cst_15 = arith.constant 5.000000e-01 : f32
    %25 = vector.broadcast %cst_15 : f32 to vector<128xf32>
    %26 = arith.mulf %25, %24 : vector<128xf32>
    %cst_16 = arith.constant 0.000000e+00 : f32
    %27 = vector.broadcast %cst_16 : f32 to vector<128xf32>
    %28 = arith.subf %27, %26 : vector<128xf32>
    %29 = vector.shape_cast %28 : vector<128xf32> to vector<1x128xf32>
    %c0_17 = arith.constant 0 : index
    %c0_18 = arith.constant 0 : index
    %30 = vector.load %arg7[%c0_17, %c0_18] : memref<1x128xf32, #tpu.memory_space<vmem>>, vector<1x128xf32>
    tpu.vector_store %arg7[%c0_17, %c0_18], %29 {strides = array<i32>} : memref<1x128xf32, #tpu.memory_space<vmem>>, vector<1x128xf32>,
    return
  }
  func.func @transform_0(%arg0: i32) -> (i32, i32) {
    %c0_i32 = arith.constant 0 : i32
    %c0_i32_0 = arith.constant 0 : i32
    return %c0_i32, %arg0 : i32, i32
  }
  func.func @transform_1(%arg0: i32) -> (i32, i32) {
    %c0_i32 = arith.constant 0 : i32
    %c0_i32_0 = arith.constant 0 : i32
    return %c0_i32, %arg0 : i32, i32
  }
  func.func @transform_2(%arg0: i32) -> (i32, i32) {
    %c0_i32 = arith.constant 0 : i32
    %c0_i32_0 = arith.constant 0 : i32
    return %c0_i32, %arg0 : i32, i32
  }
  func.func @transform_3(%arg0: i32) -> (i32, i32) {
    %c0_i32 = arith.constant 0 : i32
    %c0_i32_0 = arith.constant 0 : i32
    return %c0_i32, %arg0 : i32, i32
  }
  func.func @transform_4(%arg0: i32) -> (i32, i32) {
    %c0_i32 = arith.constant 0 : i32
    %c0_i32_0 = arith.constant 0 : i32
    return %c0_i32, %arg0 : i32, i32
  }
  func.func @transform_5(%arg0: i32) -> (i32, i32) {
    %c0_i32 = arith.constant 0 : i32
    %c0_i32_0 = arith.constant 0 : i32
    return %c0_i32, %arg0 : i32, i32
  }
  func.func @transform_6(%arg0: i32) -> (i32, i32) {
    %c0_i32 = arith.constant 0 : i32
    %c0_i32_0 = arith.constant 0 : i32
    return %c0_i32, %arg0 : i32, i32
  }
}

</mosaic_0001>

<llo_original>
// kernel: tpu_custom_call.1
$region0: #{tpu_custom_call.1}
  #allocation0 [shape = 'u32[]', space=smem, size = 0x4, offset = 0x4, fixed_abs, tag = 'smem constant byte address 0x4 - core index']
  #allocation1 [shape = 'u32[144,128]{1,0:T(1,128)}', space=vmem, size = 0x12000, scoped, tag = 'internal scratch']
  %s0 = inlined_call_operand.hbm [shape: f32[32,128], index: 0, kind: input, shape index: {}]
  %s1 = inlined_call_operand.hbm [shape: f32[32,128], index: 1, kind: input, shape index: {}]
  %s2 = inlined_call_operand.hbm [shape: f32[32,128], index: 2, kind: input, shape index: {}]
  %s3 = inlined_call_operand.hbm [shape: f32[32,128], index: 3, kind: input, shape index: {}]
  %s4 = inlined_call_operand.hbm [shape: f32[32,128], index: 4, kind: input, shape index: {}]
  %s5 = inlined_call_operand.hbm [shape: f32[32,128], index: 5, kind: input, shape index: {}]
  %s6 = inlined_call_operand.hbm [shape: f32[1,128], index: 6, kind: output, shape index: {}]
  %s7 = sld [smem:[#allocation0]]
  $region58: #{tpu_custom_call.1} parent=0
    _
  %s9 = ssub.s32 1, %s7
  %s10 = scalar_select 0, %s9, %s7
  $region1: #{tpu_custom_call.1} parent=0
    #allocation2 [shape = 'u8[16384]{0}', space=vmem, size = 0x4000, scoped, tag = 'input window, operand 0, single buffered']
    #allocation3 [shape = 's32[1]{0}', space=sflag, size = 0x4, scoped, tag = 'scoped memory for tpu_custom_call.1']
    #allocation4 [shape = 's32[1]{0}', space=sflag, size = 0x4, scoped, tag = 'scoped memory for tpu_custom_call.1']
    #allocation5 [shape = 'u8[16384]{0}', space=vmem, size = 0x4000, scoped, tag = 'input window, operand 1, single buffered']
    #allocation6 [shape = 's32[1]{0}', space=sflag, size = 0x4, scoped, tag = 'scoped memory for tpu_custom_call.1']
    #allocation7 [shape = 'u8[16384]{0}', space=vmem, size = 0x4000, scoped, tag = 'input window, operand 2, single buffered']
    #allocation8 [shape = 'u8[16384]{0}', space=vmem, size = 0x4000, scoped, tag = 'input window, operand 3, single buffered']
    #allocation9 [shape = 's32[1]{0}', space=sflag, size = 0x4, scoped, tag = 'scoped memory for tpu_custom_call.1']
    #allocation10 [shape = 'u8[16384]{0}', space=vmem, size = 0x4000, scoped, tag = 'input window, operand 4, single buffered']
    #allocation11 [shape = 'u8[16384]{0}', space=vmem, size = 0x4000, scoped, tag = 'input window, operand 5, single buffered']
    #allocation12 [shape = 's32[1]{0}', space=sflag, size = 0x4, scoped, tag = 'scoped memory for tpu_custom_call.1']
    #allocation13 [shape = 'u8[512]{0}', space=vmem, size = 0x400, scoped, tag = 'output window, operand 0, single buffered']
    %11 = vsyncpa [#allocation3], 0
    %12 = vsyncpa [#allocation6], 0
    %13 = vsyncpa [#allocation9], 0
    %14 = vsyncpa [#allocation12], 0
    %15 = vsyncpa [#allocation4], 0
    // Predicated region
    $region2: #{tpu_custom_call.1} parent=1 // pred_check
      _
    $region3: #{tpu_custom_call.1} parent=1 // pred_check_branch
      %17 = sbr.rel (0) target = $region5
    $region4: #{tpu_custom_call.1} parent=1 // pred_region
      %s19 = ssub.s32 512, 512
      %20 = vsyncadd [#allocation3], %s19
      %s21 = sshll.u32 [#allocation2], 4
      %s22 = int_to_ptr.vmem [resolvable:$true] %s21
      %27 = dma.hbm_to_vmem [thread:$0]  %s0, 512, %s22, [#allocation3], 128, 128, 8
    $region5: #{tpu_custom_call.1} parent=1 // pred_fallthru
      _
    // Predicated region
    $region6: #{tpu_custom_call.1} parent=1 // pred_check
      _
    $region7: #{tpu_custom_call.1} parent=1 // pred_check_branch
      %29 = sbr.rel (0) target = $region9
    $region8: #{tpu_custom_call.1} parent=1 // pred_region
      %s31 = ssub.s32 512, 512
      %32 = vsyncadd [#allocation6], %s31
      %s33 = sshll.u32 [#allocation5], 4
      %s34 = int_to_ptr.vmem [resolvable:$true] %s33
      %39 = dma.hbm_to_vmem [thread:$0]  %s1, 512, %s34, [#allocation6], 128, 128, 8
    $region9: #{tpu_custom_call.1} parent=1 // pred_fallthru
      _
    // Predicated region
    $region10: #{tpu_custom_call.1} parent=1 // pred_check
      _
    $region11: #{tpu_custom_call.1} parent=1 // pred_check_branch
      %41 = sbr.rel (0) target = $region13
    $region12: #{tpu_custom_call.1} parent=1 // pred_region
      %s43 = ssub.s32 512, 512
      %44 = vsyncadd [#allocation6], %s43
      %s45 = sshll.u32 [#allocation7], 4
      %s46 = int_to_ptr.vmem [resolvable:$true] %s45
      %51 = dma.hbm_to_vmem [thread:$0]  %s2, 512, %s46, [#allocation6], 128, 128, 8
    $region13: #{tpu_custom_call.1} parent=1 // pred_fallthru
      _
    // Predicated region
    $region14: #{tpu_custom_call.1} parent=1 // pred_check
      _
    $region15: #{tpu_custom_call.1} parent=1 // pred_check_branch
      %53 = sbr.rel (0) target = $region17
    $region16: #{tpu_custom_call.1} parent=1 // pred_region
      %s55 = ssub.s32 512, 512
      %56 = vsyncadd [#allocation9], %s55
      %s57 = sshll.u32 [#allocation8], 4
      %s58 = int_to_ptr.vmem [resolvable:$true] %s57
      %63 = dma.hbm_to_vmem [thread:$0]  %s3, 512, %s58, [#allocation9], 128, 128, 8
    $region17: #{tpu_custom_call.1} parent=1 // pred_fallthru
      _
    // Predicated region
    $region18: #{tpu_custom_call.1} parent=1 // pred_check
      _
    $region19: #{tpu_custom_call.1} parent=1 // pred_check_branch
      %65 = sbr.rel (0) target = $region21
    $region20: #{tpu_custom_call.1} parent=1 // pred_region
      %s67 = ssub.s32 512, 512
      %68 = vsyncadd [#allocation9], %s67
      %s69 = sshll.u32 [#allocation10], 4
      %s70 = int_to_ptr.vmem [resolvable:$true] %s69
      %75 = dma.hbm_to_vmem [thread:$0]  %s4, 512, %s70, [#allocation9], 128, 128, 8
    $region21: #{tpu_custom_call.1} parent=1 // pred_fallthru
      _
    // Predicated region
    $region22: #{tpu_custom_call.1} parent=1 // pred_check
      _
    $region23: #{tpu_custom_call.1} parent=1 // pred_check_branch
      %77 = sbr.rel (0) target = $region25
    $region24: #{tpu_custom_call.1} parent=1 // pred_region
      %s79 = ssub.s32 512, 512
      %80 = vsyncadd [#allocation12], %s79
      %s81 = sshll.u32 [#allocation11], 4
      %s82 = int_to_ptr.vmem [resolvable:$true] %s81
      %87 = dma.hbm_to_vmem [thread:$0]  %s5, 512, %s82, [#allocation12], 128, 128, 8
    $region25: #{tpu_custom_call.1} parent=1 // pred_fallthru
      _
    // Predicated region
    $region26: #{tpu_custom_call.1} parent=1 // pred_check
      _
    $region27: #{tpu_custom_call.1} parent=1 // pred_check_branch
      %89 = sbr.rel (0) target = $region29
    $region28: #{tpu_custom_call.1} parent=1 // pred_region
      %90 = dma.done [#allocation3], 512
    $region29: #{tpu_custom_call.1} parent=1 // pred_fallthru
      _
    // Predicated region
    $region30: #{tpu_custom_call.1} parent=1 // pred_check
      _
    $region31: #{tpu_custom_call.1} parent=1 // pred_check_branch
      %92 = sbr.rel (0) target = $region33
    $region32: #{tpu_custom_call.1} parent=1 // pred_region
      %93 = dma.done [#allocation6], 512
    $region33: #{tpu_custom_call.1} parent=1 // pred_fallthru
      _
    // Predicated region
    $region34: #{tpu_custom_call.1} parent=1 // pred_check
      _
    $region35: #{tpu_custom_call.1} parent=1 // pred_check_branch
      %95 = sbr.rel (0) target = $region37
    $region36: #{tpu_custom_call.1} parent=1 // pred_region
      %96 = dma.done [#allocation6], 512
    $region37: #{tpu_custom_call.1} parent=1 // pred_fallthru
      _
    // Predicated region
    $region38: #{tpu_custom_call.1} parent=1 // pred_check
      _
    $region39: #{tpu_custom_call.1} parent=1 // pred_check_branch
      %98 = sbr.rel (0) target = $region41
    $region40: #{tpu_custom_call.1} parent=1 // pred_region
      %99 = dma.done [#allocation9], 512
    $region41: #{tpu_custom_call.1} parent=1 // pred_fallthru
      _
    // Predicated region
    $region42: #{tpu_custom_call.1} parent=1 // pred_check
      _
    $region43: #{tpu_custom_call.1} parent=1 // pred_check_branch
      %101 = sbr.rel (0) target = $region45
    $region44: #{tpu_custom_call.1} parent=1 // pred_region
      %102 = dma.done [#allocation9], 512
    $region45: #{tpu_custom_call.1} parent=1 // pred_fallthru
      _
    // Predicated region
    $region46: #{tpu_custom_call.1} parent=1 // pred_check
      _
    $region47: #{tpu_custom_call.1} parent=1 // pred_check_branch
      %104 = sbr.rel (0) target = $region49
    $region48: #{tpu_custom_call.1} parent=1 // pred_region
      %105 = dma.done [#allocation12], 512
    $region49: #{tpu_custom_call.1} parent=1 // pred_fallthru
      _
    %v106 = vld [vmem:[#allocation5] sm:$0xff]
    %v107 = vld [vmem:[#allocation5 + $0x8] sm:$0xff]
    %v108 = vld [vmem:[#allocation5 + $0x10] sm:$0xff]
    %v109 = vld [vmem:[#allocation5 + $0x18] sm:$0xff]
    %v110 = vld [vmem:[#allocation11] sm:$0xff]
    %v111 = vld [vmem:[#allocation11 + $0x8] sm:$0xff]
    %v112 = vld [vmem:[#allocation11 + $0x10] sm:$0xff]
    %v113 = vld [vmem:[#allocation11 + $0x18] sm:$0xff]
    %v114 = vadd.f32 %v106, %v110
    %v115 = vadd.f32 %v107, %v111
    %v116 = vadd.f32 %v108, %v112
    %v117 = vadd.f32 %v109, %v113
    %v118 = vld [vmem:[#allocation8] sm:$0xff]
    %v119 = vld [vmem:[#allocation8 + $0x8] sm:$0xff]
    %v120 = vld [vmem:[#allocation8 + $0x10] sm:$0xff]
    %v121 = vld [vmem:[#allocation8 + $0x18] sm:$0xff]
    %v122 = vmax.f32 %v118, 1.1920929e-07
    %v123 = vmax.f32 %v119, 1.1920929e-07
    %v124 = vmax.f32 %v120, 1.1920929e-07
    %v125 = vmax.f32 %v121, 1.1920929e-07
    %v126 = vmax.f32 %v114, 1.1920929e-07
    %v127 = vmax.f32 %v115, 1.1920929e-07
    %v128 = vmax.f32 %v116, 1.1920929e-07
    %v129 = vmax.f32 %v117, 1.1920929e-07
    %v130 = vld [vmem:[#allocation7] sm:$0xff]
    %v131 = vld [vmem:[#allocation7 + $0x8] sm:$0xff]
    %v132 = vld [vmem:[#allocation7 + $0x10] sm:$0xff]
    %v133 = vld [vmem:[#allocation7 + $0x18] sm:$0xff]
    %v134 = vld [vmem:[#allocation2] sm:$0xff]
    %v135 = vld [vmem:[#allocation2 + $0x8] sm:$0xff]
    %v136 = vld [vmem:[#allocation2 + $0x10] sm:$0xff]
    %v137 = vld [vmem:[#allocation2 + $0x18] sm:$0xff]
    %v138 = vsub.f32 %v130, %v134
    %v139 = vsub.f32 %v131, %v135
    %v140 = vsub.f32 %v132, %v136
    %v141 = vsub.f32 %v133, %v137
    %v142 = vld [vmem:[#allocation10] sm:$0xff]
    %v143 = vld [vmem:[#allocation10 + $0x8] sm:$0xff]
    %v144 = vld [vmem:[#allocation10 + $0x10] sm:$0xff]
    %v145 = vld [vmem:[#allocation10 + $0x18] sm:$0xff]
    %v146 = vadd.f32 %v138, %v142
    %v147 = vadd.f32 %v139, %v143
    %v148 = vadd.f32 %v140, %v144
    %v149 = vadd.f32 %v141, %v145
    %v150 = vrcp.pop %v122
    %v151 = vmul.f32 1.0, %v150
    %v152 = vrcp.pop %v123
    %v153 = vmul.f32 1.0, %v152
    %v154 = vrcp.pop %v124
    %v155 = vmul.f32 1.0, %v154
    %v156 = vrcp.pop %v125
    %v157 = vmul.f32 1.0, %v156
    %v158 = vmul.f32 %v146, %v146
    %v159 = vmul.f32 %v147, %v147
    %v160 = vmul.f32 %v148, %v148
    %v161 = vmul.f32 %v149, %v149
    %v162 = vadd.f32 %v114, %v158
    %v163 = vadd.f32 %v115, %v159
    %v164 = vadd.f32 %v116, %v160
    %v165 = vadd.f32 %v117, %v161
    %v166 = vmul.f32 %v162, %v151
    %v167 = vmul.f32 %v163, %v153
    %v168 = vmul.f32 %v164, %v155
    %v169 = vmul.f32 %v165, %v157
    %v170 = vlog2.pop %v122
    %v171 = vmul.f32 %v170, 0.6931472
    %v172 = vlog2.pop %v123
    %v173 = vmul.f32 %v172, 0.6931472
    %v174 = vlog2.pop %v124
    %v175 = vmul.f32 %v174, 0.6931472
    %v176 = vlog2.pop %v125
    %v177 = vmul.f32 %v176, 0.6931472
    %v178 = vadd.f32 %v166, %v171
    %v179 = vadd.f32 %v167, %v173
    %v180 = vadd.f32 %v168, %v175
    %v181 = vadd.f32 %v169, %v177
    %v182 = vlog2.pop %v126
    %v183 = vmul.f32 %v182, 0.6931472
    %v184 = vlog2.pop %v127
    %v185 = vmul.f32 %v184, 0.6931472
    %v186 = vlog2.pop %v128
    %v187 = vmul.f32 %v186, 0.6931472
    %v188 = vlog2.pop %v129
    %v189 = vmul.f32 %v188, 0.6931472
    %v190 = vsub.f32 %v178, %v183
    %v191 = vsub.f32 %v179, %v185
    %v192 = vsub.f32 %v180, %v187
    %v193 = vsub.f32 %v181, %v189
    %v194 = vadd.f32 %v190, %v191
    %v195 = vadd.f32 %v194, %v192
    %v196 = vadd.f32 %v195, %v193
    %v197 = vrot.slane %v196, 4
    %v198 = vadd.f32 %v196, %v197
    %v199 = vrot.slane %v198, 2
    %v200 = vadd.f32 %v198, %v199
    %v201 = vrot.slane %v200, 1
    %v202 = vadd.f32 %v200, %v201
    %v203 = vsub.f32 %v202, 32.0
    %v204 = vmul.f32 %v203, 0.5
    %v205 = vsub.f32 0.0, %v204
    %206 = vst [vmem:[#allocation13] sm:$0x1] %v205
    // Predicated region
    $region50: #{tpu_custom_call.1} parent=1 // pred_check
      _
    $region51: #{tpu_custom_call.1} parent=1 // pred_check_branch
      %208 = sbr.rel (0) target = $region53
    $region52: #{tpu_custom_call.1} parent=1 // pred_region
      %s210 = ssub.s32 16, 16
      %211 = vsyncadd [#allocation4], %s210
      %s213 = sshll.u32 [#allocation13], 4
      %s214 = int_to_ptr.vmem [resolvable:$true] %s213
      %216 = dma.vmem_to_hbm [thread:$0]  %s214, 16, %s6, [#allocation4]
    $region53: #{tpu_custom_call.1} parent=1 // pred_fallthru
      _
    // Predicated region
    $region54: #{tpu_custom_call.1} parent=1 // pred_check
      _
    $region55: #{tpu_custom_call.1} parent=1 // pred_check_branch
      %218 = sbr.rel (0) target = $region57
    $region56: #{tpu_custom_call.1} parent=1 // pred_region
      %219 = dma.done [#allocation4], 16
    $region57: #{tpu_custom_call.1} parent=1 // pred_fallthru
      _
    %220 = vsyncpa [#allocation3], 1
    %221 = vsyncpa [#allocation6], 1
    %222 = vsyncpa [#allocation9], 1
    %223 = vsyncpa [#allocation12], 1
    %224 = vsyncpa [#allocation4], 1

</llo_original>
